<compile_context>
chip_gen: v7x
topology: tpu7x:2x2x1
jax: 0.10.0
libtpu: 0.0.40
codegen_flags: <defaults>
</compile_context>

<pallas_src>
import functools

import jax
import jax.numpy as jnp
from jax.experimental import pallas as pl
from jax.experimental.pallas import tpu as pltpu

_VMEM = functools.partial(pl.BlockSpec, memory_space=pltpu.MemorySpace.VMEM)


# --------------------------- fused forward kernel ---------------------------
def _fused_rnn_kernel(x_ref, mask6_ref, pswap_ref, pout_ref, *refs,
                      hidden_size, num_layers):
    """refs = (Wih_0, b_i_0, Whh_0, b_hn_0, ..., Wih_{L-1}, ..., att_w, out)."""
    H = hidden_size
    o_ref = refs[-1]
    attw_ref = refs[-2]
    layer_refs = refs[:-2]

    # ---- stage 1: ReLU + adaptive_avg_pool2d((1, 1)) ----
    # x_ref is (2B, C, hw), rows in the module's NATIVE order: row = 2*b + t.
    x = x_ref[...]
    NB = x.shape[0]                                   # 2B
    inv_hw = 1.0 / x.shape[-1]
    pooled = jnp.sum(jnp.maximum(x, 0.0), axis=-1) * inv_hw          # (2B, C) f32

    # constant selection patterns (built host-side once)
    mask6 = mask6_ref[...]      # (2B, 6H): 1 where row-parity(time) XNOR fwd-direction column
    pswap = pswap_ref[...]      # (2B, 2B): pair-swap permutation  (row 2b+t -> row 2b+(1-t))
    sel_tm = mask6[:, :2 * H]   # (2B, 2H): same XNOR pattern restricted to [h_f | h_b] columns
    m2 = sel_tm[0:1, :]         # (1, 2H):  forward-half column mask

    # ---- stage 2: num_layers x bidirectional GRU (seq_len == 2) ----
    # State is carried at 2B rows; each (b,0)/(b,1) row pair holds identical [h_f | h_b]
    # (duplicate rows are free: B=4 pads to the 8-sublane tile anyway) so every layer's
    # input matmul is a single MXU push and no sublane compaction ever touches x.
    xin = pooled                                       # layer input, rows in native (b,t) order
    hs0 = hs1 = None
    for l in range(num_layers):
        Wih = layer_refs[4 * l][...]                   # (Din, 6H) bf16, gate-major/dir-minor cols
        b_i = layer_refs[4 * l + 1][...]               # (1, 6H)  f32  (bhh for r,z folded in)
        Whh = layer_refs[4 * l + 2][...]               # (2H, 6H) bf16, block-diag over directions
        b_hn = jnp.broadcast_to(layer_refs[4 * l + 3][...], (NB, 2 * H))  # hoisted once

        # ONE input-side matmul per layer: both timesteps x both directions (bf16 MXU).
        gi = jnp.dot(xin.astype(jnp.bfloat16), Wih,
                     preferred_element_type=jnp.float32) + b_i            # (2B, 6H)
        # exact time-swap of rows within each batch pair (tiny f32 matmul, off the recurrence)
        gi_sw = jnp.dot(pswap, gi, preferred_element_type=jnp.float32)
        # per-step inputs: fwd columns consume time s, bwd columns consume time 1-s
        g0 = gi_sw + mask6 * (gi - gi_sw)              # recurrence step 0
        g1 = gi + mask6 * (gi_sw - gi)                 # recurrence step 1

        # -- step 0: previous hidden state is zero -> the recurrent matmul vanishes (exact) --
        sig0 = jax.nn.sigmoid(g0[:, :4 * H])           # [r_f r_b z_f z_b], 4H = 128 lanes
        r0 = sig0[:, :2 * H]
        z0 = sig0[:, 2 * H:4 * H]
        n0 = jnp.tanh(g0[:, 4 * H:] + r0 * b_hn)
        hs0 = (1.0 - z0) * n0                          # [h_f(0) | h_b(1)]  (duplicated rows)

        # -- step 1: single recurrent matmul for both directions via block-diagonal Whh --
        gh = jnp.dot(hs0.astype(jnp.bfloat16), Whh, preferred_element_type=jnp.float32)
        sig1 = jax.nn.sigmoid(g1[:, :4 * H] + gh[:, :4 * H])
        r1 = sig1[:, :2 * H]
        z1 = sig1[:, 2 * H:4 * H]
        n1 = jnp.tanh(g1[:, 4 * H:] + r1 * (gh[:, 4 * H:] + b_hn))
        hs1 = (1.0 - z1) * n1 + z1 * hs0               # [h_f(1) | h_b(0)]  (duplicated rows)

        if l + 1 < num_layers:
            # per-row time-major outputs [h_f(t) | h_b(t)] -> next layer's single matmul input
            xin = hs1 + sel_tm * (hs0 - hs1)           # (2B, 2H)

    # ---- stage 3: H = fwd + bwd, temporal attention over 2 timesteps, tanh (Dropout=id) ----
    out_t0 = hs1 + m2 * (hs0 - hs1)                    # every row = [h_f(0) | h_b(0)] of its batch
    out_t1 = hs0 + m2 * (hs1 - hs0)                    # every row = [h_f(1) | h_b(1)]
    h0 = out_t0[:, :H] + out_t0[:, H:]                 # (2B, H)
    h1 = out_t1[:, :H] + out_t1[:, H:]
    w = attw_ref[...]                                  # (1, H)
    s0 = jnp.sum(jnp.tanh(h0) * w, axis=-1, keepdims=True)          # (2B, 1)
    s1 = jnp.sum(jnp.tanh(h1) * w, axis=-1, keepdims=True)
    mmax = jnp.maximum(s0, s1)
    e0 = jnp.exp(s0 - mmax)
    e1 = jnp.exp(s1 - mmax)
    inv = pl.reciprocal(e0 + e1, approx=True)          # EUP slot
    r_vec = (e0 * inv) * h0 + (e1 * inv) * h1          # (2B, H), duplicated rows
    # compact duplicated rows to one row per batch (tiny exact f32 selection matmul) + tanh
    o_ref[...] = jnp.tanh(jnp.dot(pout_ref[...], r_vec, preferred_element_type=jnp.float32))


# ----------------------------- wrapper -----------------------------
@functools.partial(jax.jit, static_argnums=(1, 3, 4))
def rnn_module_forward(x, b_z, params, hidden_size, num_layers):
    N, C, Hh, Ww = x.shape
    assert N == 2 * b_z, "torch.split(x, 2, dim=0) with b_z chunks requires N == 2*b_z"
    hw = Hh * Ww

    # NO data reordering of x here (review item 1): the (b,t)-interleaved row order of the
    # PyTorch module is consumed directly; the flatten below is a free contiguous reshape.
    x_k = x.reshape(N, C, hw)

    inputs = [x_k, params["mask6"], params["p_swap"], params["p_out"]]
    for l in range(num_layers):
        p = params["packed_gru"][l]
        inputs += [p["Wih"], p["b_i"], p["Whh"], p["b_hn"]]
    inputs.append(params["att_w"].reshape(1, hidden_size))

    kernel = functools.partial(_fused_rnn_kernel, hidden_size=hidden_size,
                               num_layers=num_layers)
    # No grid: whole working set (<0.5 MiB) fits VMEM on v5e/v6e/v7x.
    # TODO(synk): add a batch-parallel grid axis (dimension_semantics=("parallel",)) to
    # engage v7x's second TensorCore once b_z grows well beyond one sublane tile.
    return pl.pallas_call(
        kernel,
        out_shape=jax.ShapeDtypeStruct((b_z, hidden_size), jnp.float32),
        in_specs=[_VMEM()] * len(inputs),
        out_specs=_VMEM(),
    )(*inputs)


# ----------------------------- parameter init & packing -----------------------------
def init_params(key, input_size, hidden_size, num_layers):
    """PyTorch-style GRU init: uniform(-1/sqrt(H), 1/sqrt(H)). Weights stored pre-transposed
    (wih: (Din, 3H), whh: (H, 3H)) with PyTorch gate order [r, z, n]."""
    bound = float(1.0 / (hidden_size ** 0.5))
    params = {"gru": []}
    for layer_idx in range(num_layers):
        d_in = input_size if layer_idx == 0 else 2 * hidden_size
        layer = {}
        for direction in ("f", "b"):
            key, k1, k2, k3, k4 = jax.random.split(key, 5)
            layer[f"wih_{direction}"] = jax.random.uniform(
                k1, (d_in, 3 * hidden_size), jnp.float32, -bound, bound)
            layer[f"whh_{direction}"] = jax.random.uniform(
                k2, (hidden_size, 3 * hidden_size), jnp.float32, -bound, bound)
            layer[f"bih_{direction}"] = jax.random.uniform(
                k3, (1, 3 * hidden_size), jnp.float32, -bound, bound)
            layer[f"bhh_{direction}"] = jax.random.uniform(
                k4, (1, 3 * hidden_size), jnp.float32, -bound, bound)
        params["gru"].append(layer)
    key, kw = jax.random.split(key)
    params["att_w"] = 0.1 * jax.random.normal(kw, (hidden_size,), jnp.float32)
    return params


def pack_params(raw, hidden_size, num_layers, b_z):
    """One-time host-side repack into the fused kernel layout.

    Column layout (6H wide), gate-major / direction-minor:
      [ r_f | r_b | z_f | z_b | n_f | n_b ]   each block H wide.
    Hidden-state layout (2H wide): [ h_f | h_b ].
    Matmul weights are stored bf16 (MXU operands); biases stay f32.
    """
    H = hidden_size

    def interleave(a_f, a_b, rows):
        return jnp.stack([a_f.reshape(rows, 3, H), a_b.reshape(rows, 3, H)],
                         axis=2).reshape(rows, 6 * H)

    packed = []
    for l in range(num_layers):
        p = raw["gru"][l]
        d_in = p["wih_f"].shape[0]
        Wih = interleave(p["wih_f"], p["wih_b"], d_in)                    # (Din, 6H)
        bih = interleave(p["bih_f"], p["bih_b"], 1)                       # (1, 6H)
        bhh = interleave(p["bhh_f"], p["bhh_b"], 1)                       # (1, 6H)
        zero = jnp.zeros((H, 3, H), jnp.float32)
        top = jnp.stack([p["whh_f"].reshape(H, 3, H), zero], axis=2).reshape(H, 6 * H)
        bot = jnp.stack([zero, p["whh_b"].reshape(H, 3, H)], axis=2).reshape(H, 6 * H)
        Whh = jnp.concatenate([top, bot], axis=0)                         # (2H, 6H) block-diag
        # fold r,z recurrent biases into the input bias; keep only the n-gate recurrent bias
        b_i = bih.at[:, :4 * H].add(bhh[:, :4 * H])
        b_hn = bhh[:, 4 * H:]                                             # (1, 2H)
        packed.append(dict(Wih=Wih.astype(jnp.bfloat16), b_i=b_i,
                           Whh=Whh.astype(jnp.bfloat16), b_hn=b_hn))

    # Constant masks / permutations for the in-kernel time demux of (b,t)-interleaved rows.
    even_row = (jnp.arange(2 * b_z) % 2 == 0)[:, None]                    # time-0 rows
    fwd_col6 = jnp.tile(jnp.concatenate([jnp.ones((H,), dtype=bool),
                                         jnp.zeros((H,), dtype=bool)]), 3)[None, :]
    mask6 = (even_row == fwd_col6).astype(jnp.float32)                    # (2B, 6H) XNOR pattern
    eye = jnp.eye(2 * b_z, dtype=jnp.float32)
    p_swap = eye.reshape(b_z, 2, 2 * b_z)[:, ::-1, :].reshape(2 * b_z, 2 * b_z)  # pair swap
    p_out = eye[0::2, :]                                                  # pick the t=0 row of each pair
    return {"packed_gru": packed, "mask6": mask6, "p_swap": p_swap, "p_out": p_out,
            "att_w": raw["att_w"]}


# ----------------------------- pure-JAX reference (for checking) -----------------------------
def rnn_module_reference(x, b_z, raw, hidden_size, num_layers):
    N, C = x.shape[0], x.shape[1]
    Hd = hidden_size
    feat = jnp.mean(jnp.maximum(x, 0.0).reshape(N, C, -1), axis=-1)
    y = feat.reshape(b_z, 2, C)                       # y[b, t] = feat[2b + t]

    def cell(xt, h, wih, whh, bih, bhh):
        gi = xt @ wih + bih
        gh = h @ whh + bhh
        r = jax.nn.sigmoid(gi[:, :Hd] + gh[:, :Hd])
        z = jax.nn.sigmoid(gi[:, Hd:2 * Hd] + gh[:, Hd:2 * Hd])
        n = jnp.tanh(gi[:, 2 * Hd:] + r * gh[:, 2 * Hd:])
        return (1.0 - z) * n + z * h

    inp = y
    out_f = out_b = None
    for l in range(num_layers):
        p = raw["gru"][l]
        B, T, _ = inp.shape
        hf = jnp.zeros((B, Hd), jnp.float32); fs = []
        for t in range(T):
            hf = cell(inp[:, t], hf, p["wih_f"], p["whh_f"], p["bih_f"], p["bhh_f"])
            fs.append(hf)
        hb = jnp.zeros((B, Hd), jnp.float32); bs = [None] * T
        for t in range(T - 1, -1, -1):
            hb = cell(inp[:, t], hb, p["wih_b"], p["whh_b"], p["bih_b"], p["bhh_b"])
            bs[t] = hb
        out_f = jnp.stack(fs, axis=1); out_b = jnp.stack(bs, axis=1)
        inp = jnp.concatenate([out_f, out_b], axis=-1)

    Hsum = out_f + out_b
    scores = jnp.sum(jnp.tanh(Hsum) * raw["att_w"], axis=-1)
    alpha = jax.nn.softmax(scores, axis=-1)
    r = jnp.sum(alpha[..., None] * Hsum, axis=1)
    return jnp.tanh(r)


# ----------------------------- main -----------------------------
if __name__ == "__main__":
    input_size = 16        # channel count C of the conv-feature input
    hidden_size = 32
    num_layers = 2
    b_z = 4
    N, C, Hh, Ww = 2 * b_z, input_size, 16, 16

    key = jax.random.PRNGKey(0)
    kx, kp = jax.random.split(key)
    x = jax.random.normal(kx, (N, C, Hh, Ww), jnp.float32)
    raw = init_params(kp, input_size, hidden_size, num_layers)
    params = pack_params(raw, hidden_size, num_layers, b_z)

    h = rnn_module_forward(x, b_z, params, hidden_size, num_layers)
    h = jax.block_until_ready(h)
    assert h.shape == (b_z, hidden_size)
    assert bool(jnp.all(jnp.isfinite(h)))

    # Tolerance accounts for bf16 MXU operands + approx reciprocal in the kernel vs f32 ref.
    h_ref = rnn_module_reference(x, b_z, raw, hidden_size, num_layers)
    max_err = float(jnp.max(jnp.abs(h - h_ref)))
    assert bool(jnp.allclose(h, h_ref, atol=3e-2, rtol=3e-2)), f"max_err={max_err}"
    print("KERNEL_OK")
</pallas_src>

<mosaic_0001>
module attributes {stable_mosaic.version = 11 : i64} {
  func.func @_fused_rnn_kernel(%arg0: memref<8x16x256xf32, #tpu.memory_space<vmem>>, %arg1: memref<8x192xf32, #tpu.memory_space<vmem>>, %arg2: memref<8x8xf32, #tpu.memory_space<vmem>>, %arg3: memref<4x8xf32, #tpu.memory_space<vmem>>, %arg4: memref<16x192xbf16, #tpu.memory_space<vmem>>, %arg5: memref<1x192xf32, #tpu.memory_space<vmem>>, %arg6: memref<64x192xbf16, #tpu.memory_space<vmem>>, %arg7: memref<1x64xf32, #tpu.memory_space<vmem>>, %arg8: memref<64x192xbf16, #tpu.memory_space<vmem>>, %arg9: memref<1x192xf32, #tpu.memory_space<vmem>>, %arg10: memref<64x192xbf16, #tpu.memory_space<vmem>>, %arg11: memref<1x64xf32, #tpu.memory_space<vmem>>, %arg12: memref<1x32xf32, #tpu.memory_space<vmem>>, %arg13: memref<4x32xf32, #tpu.memory_space<vmem>>) attributes {dimension_semantics = [], scalar_prefetch = 0 : i64, scratch_operands = 0 : i64, tpu.core_type = #tpu.core_type<tc>} {
    %c0 = arith.constant 0 : index
    %c0_0 = arith.constant 0 : index
    %c0_1 = arith.constant 0 : index
    %0 = vector.load %arg0[%c0, %c0_0, %c0_1] : memref<8x16x256xf32, #tpu.memory_space<vmem>>, vector<8x16x256xf32>
    %cst = arith.constant 0.000000e+00 : f32
    %1 = vector.broadcast %cst : f32 to vector<8x16x256xf32>
    %2 = arith.maximumf %0, %1 : vector<8x16x256xf32>
    %cst_2 = arith.constant dense<0.000000e+00> : vector<8x16xf32>
    %3 = vector.multi_reduction <add>, %2, %cst_2 [2] : vector<8x16x256xf32> to vector<8x16xf32>
    %cst_3 = arith.constant 3.906250e-03 : f32
    %4 = vector.broadcast %cst_3 : f32 to vector<8x16xf32>
    %5 = arith.mulf %3, %4 : vector<8x16xf32>
    %c0_4 = arith.constant 0 : index
    %c0_5 = arith.constant 0 : index
    %6 = vector.load %arg1[%c0_4, %c0_5] : memref<8x192xf32, #tpu.memory_space<vmem>>, vector<8x192xf32>
    %c0_6 = arith.constant 0 : index
    %c0_7 = arith.constant 0 : index
    %7 = vector.load %arg2[%c0_6, %c0_7] : memref<8x8xf32, #tpu.memory_space<vmem>>, vector<8x8xf32>
    %8 = vector.extract_strided_slice %6 {offsets = [0, 0], sizes = [8, 64], strides = [1, 1]} : vector<8x192xf32> to vector<8x64xf32>
    %9 = vector.extract_strided_slice %8 {offsets = [0, 0], sizes = [1, 64], strides = [1, 1]} : vector<8x64xf32> to vector<1x64xf32>
    %c0_8 = arith.constant 0 : index
    %c0_9 = arith.constant 0 : index
    %10 = vector.load %arg4[%c0_8, %c0_9] : memref<16x192xbf16, #tpu.memory_space<vmem>>, vector<16x192xbf16>
    %c0_10 = arith.constant 0 : index
    %c0_11 = arith.constant 0 : index
    %11 = vector.load %arg5[%c0_10, %c0_11] : memref<1x192xf32, #tpu.memory_space<vmem>>, vector<1x192xf32>
    %c0_12 = arith.constant 0 : index
    %c0_13 = arith.constant 0 : index
    %12 = vector.load %arg6[%c0_12, %c0_13] : memref<64x192xbf16, #tpu.memory_space<vmem>>, vector<64x192xbf16>
    %c0_14 = arith.constant 0 : index
    %c0_15 = arith.constant 0 : index
    %13 = vector.load %arg7[%c0_14, %c0_15] : memref<1x64xf32, #tpu.memory_space<vmem>>, vector<1x64xf32>
    %14 = vector.shape_cast %13 : vector<1x64xf32> to vector<1x64xf32>
    %15 = vector.broadcast %14 : vector<1x64xf32> to vector<8x64xf32>
    %16 = arith.truncf %5 : vector<8x16xf32> to vector<8x16xbf16>
    %cst_16 = arith.constant dense<0.000000e+00> : vector<8x192xf32>
    %17 = tpu.matmul %16, %10, %cst_16 {dimension_numbers = #tpu.dot_dimension_numbers<[1], [0], [0], [1], [0, 0, 1, 1], [], []>} : vector<8x16xbf16>, vector<16x192xbf16>, vector<8x192xf32> -> vector<8x192xf32>
    %18 = vector.broadcast %11 : vector<1x192xf32> to vector<8x192xf32>
    %19 = arith.addf %17, %18 : vector<8x192xf32>
    %cst_17 = arith.constant dense<0.000000e+00> : vector<8x192xf32>
    %20 = tpu.matmul %7, %19, %cst_17 {dimension_numbers = #tpu.dot_dimension_numbers<[1], [0], [0], [1], [0, 0, 1, 1], [], []>} : vector<8x8xf32>, vector<8x192xf32>, vector<8x192xf32> -> vector<8x192xf32>
    %21 = arith.subf %19, %20 : vector<8x192xf32>
    %22 = arith.mulf %6, %21 : vector<8x192xf32>
    %23 = arith.addf %20, %22 : vector<8x192xf32>
    %24 = arith.subf %20, %19 : vector<8x192xf32>
    %25 = arith.mulf %6, %24 : vector<8x192xf32>
    %26 = arith.addf %19, %25 : vector<8x192xf32>
    %27 = vector.extract_strided_slice %23 {offsets = [0, 0], sizes = [8, 128], strides = [1, 1]} : vector<8x192xf32> to vector<8x128xf32>
    %28 = arith.negf %27 : vector<8x128xf32>
    %29 = math.exp %28 : vector<8x128xf32>
    %cst_18 = arith.constant 1.000000e+00 : f32
    %30 = vector.broadcast %cst_18 : f32 to vector<8x128xf32>
    %31 = arith.addf %30, %29 : vector<8x128xf32>
    %32 = arith.divf %30, %31 : vector<8x128xf32>
    %33 = vector.extract_strided_slice %32 {offsets = [0, 0], sizes = [8, 64], strides = [1, 1]} : vector<8x128xf32> to vector<8x64xf32>
    %34 = vector.extract_strided_slice %32 {offsets = [0, 64], sizes = [8, 64], strides = [1, 1]} : vector<8x128xf32> to vector<8x64xf32>
    %35 = vector.extract_strided_slice %23 {offsets = [0, 128], sizes = [8, 64], strides = [1, 1]} : vector<8x192xf32> to vector<8x64xf32>
    %36 = arith.mulf %33, %15 : vector<8x64xf32>
    %37 = arith.addf %35, %36 : vector<8x64xf32>
    %38 = math.tanh %37 : vector<8x64xf32>
    %cst_19 = arith.constant 1.000000e+00 : f32
    %39 = vector.broadcast %cst_19 : f32 to vector<8x64xf32>
    %40 = arith.subf %39, %34 : vector<8x64xf32>
    %41 = arith.mulf %40, %38 : vector<8x64xf32>
    %42 = arith.truncf %41 : vector<8x64xf32> to vector<8x64xbf16>
    %cst_20 = arith.constant dense<0.000000e+00> : vector<8x192xf32>
    %43 = tpu.matmul %42, %12, %cst_20 {dimension_numbers = #tpu.dot_dimension_numbers<[1], [0], [0], [1], [0, 0, 1, 1], [], []>} : vector<8x64xbf16>, vector<64x192xbf16>, vector<8x192xf32> -> vector<8x192xf32>
    %44 = vector.extract_strided_slice %26 {offsets = [0, 0], sizes = [8, 128], strides = [1, 1]} : vector<8x192xf32> to vector<8x128xf32>
    %45 = vector.extract_strided_slice %43 {offsets = [0, 0], sizes = [8, 128], strides = [1, 1]} : vector<8x192xf32> to vector<8x128xf32>
    %46 = arith.addf %44, %45 : vector<8x128xf32>
    %47 = arith.negf %46 : vector<8x128xf32>
    %48 = math.exp %47 : vector<8x128xf32>
    %cst_21 = arith.constant 1.000000e+00 : f32
    %49 = vector.broadcast %cst_21 : f32 to vector<8x128xf32>
    %50 = arith.addf %49, %48 : vector<8x128xf32>
    %51 = arith.divf %49, %50 : vector<8x128xf32>
    %52 = vector.extract_strided_slice %51 {offsets = [0, 0], sizes = [8, 64], strides = [1, 1]} : vector<8x128xf32> to vector<8x64xf32>
    %53 = vector.extract_strided_slice %51 {offsets = [0, 64], sizes = [8, 64], strides = [1, 1]} : vector<8x128xf32> to vector<8x64xf32>
    %54 = vector.extract_strided_slice %26 {offsets = [0, 128], sizes = [8, 64], strides = [1, 1]} : vector<8x192xf32> to vector<8x64xf32>
    %55 = vector.extract_strided_slice %43 {offsets = [0, 128], sizes = [8, 64], strides = [1, 1]} : vector<8x192xf32> to vector<8x64xf32>
    %56 = arith.addf %55, %15 : vector<8x64xf32>
    %57 = arith.mulf %52, %56 : vector<8x64xf32>
    %58 = arith.addf %54, %57 : vector<8x64xf32>
    %59 = math.tanh %58 : vector<8x64xf32>
    %cst_22 = arith.constant 1.000000e+00 : f32
    %60 = vector.broadcast %cst_22 : f32 to vector<8x64xf32>
    %61 = arith.subf %60, %53 : vector<8x64xf32>
    %62 = arith.mulf %61, %59 : vector<8x64xf32>
    %63 = arith.mulf %53, %41 : vector<8x64xf32>
    %64 = arith.addf %62, %63 : vector<8x64xf32>
    %65 = arith.subf %41, %64 : vector<8x64xf32>
    %66 = arith.mulf %8, %65 : vector<8x64xf32>
    %67 = arith.addf %64, %66 : vector<8x64xf32>
    %c0_23 = arith.constant 0 : index
    %c0_24 = arith.constant 0 : index
    %68 = vector.load %arg8[%c0_23, %c0_24] : memref<64x192xbf16, #tpu.memory_space<vmem>>, vector<64x192xbf16>
    %c0_25 = arith.constant 0 : index
    %c0_26 = arith.constant 0 : index
    %69 = vector.load %arg9[%c0_25, %c0_26] : memref<1x192xf32, #tpu.memory_space<vmem>>, vector<1x192xf32>
    %c0_27 = arith.constant 0 : index
    %c0_28 = arith.constant 0 : index
    %70 = vector.load %arg10[%c0_27, %c0_28] : memref<64x192xbf16, #tpu.memory_space<vmem>>, vector<64x192xbf16>
    %c0_29 = arith.constant 0 : index
    %c0_30 = arith.constant 0 : index
    %71 = vector.load %arg11[%c0_29, %c0_30] : memref<1x64xf32, #tpu.memory_space<vmem>>, vector<1x64xf32>
    %72 = vector.shape_cast %71 : vector<1x64xf32> to vector<1x64xf32>
    %73 = vector.broadcast %72 : vector<1x64xf32> to vector<8x64xf32>
    %74 = arith.truncf %67 : vector<8x64xf32> to vector<8x64xbf16>
    %cst_31 = arith.constant dense<0.000000e+00> : vector<8x192xf32>
    %75 = tpu.matmul %74, %68, %cst_31 {dimension_numbers = #tpu.dot_dimension_numbers<[1], [0], [0], [1], [0, 0, 1, 1], [], []>} : vector<8x64xbf16>, vector<64x192xbf16>, vector<8x192xf32> -> vector<8x192xf32>
    %76 = vector.broadcast %69 : vector<1x192xf32> to vector<8x192xf32>
    %77 = arith.addf %75, %76 : vector<8x192xf32>
    %cst_32 = arith.constant dense<0.000000e+00> : vector<8x192xf32>
    %78 = tpu.matmul %7, %77, %cst_32 {dimension_numbers = #tpu.dot_dimension_numbers<[1], [0], [0], [1], [0, 0, 1, 1], [], []>} : vector<8x8xf32>, vector<8x192xf32>, vector<8x192xf32> -> vector<8x192xf32>
    %79 = arith.subf %77, %78 : vector<8x192xf32>
    %80 = arith.mulf %6, %79 : vector<8x192xf32>
    %81 = arith.addf %78, %80 : vector<8x192xf32>
    %82 = arith.subf %78, %77 : vector<8x192xf32>
    %83 = arith.mulf %6, %82 : vector<8x192xf32>
    %84 = arith.addf %77, %83 : vector<8x192xf32>
    %85 = vector.extract_strided_slice %81 {offsets = [0, 0], sizes = [8, 128], strides = [1, 1]} : vector<8x192xf32> to vector<8x128xf32>
    %86 = arith.negf %85 : vector<8x128xf32>
    %87 = math.exp %86 : vector<8x128xf32>
    %cst_33 = arith.constant 1.000000e+00 : f32
    %88 = vector.broadcast %cst_33 : f32 to vector<8x128xf32>
    %89 = arith.addf %88, %87 : vector<8x128xf32>
    %90 = arith.divf %88, %89 : vector<8x128xf32>
    %91 = vector.extract_strided_slice %90 {offsets = [0, 0], sizes = [8, 64], strides = [1, 1]} : vector<8x128xf32> to vector<8x64xf32>
    %92 = vector.extract_strided_slice %90 {offsets = [0, 64], sizes = [8, 64], strides = [1, 1]} : vector<8x128xf32> to vector<8x64xf32>
    %93 = vector.extract_strided_slice %81 {offsets = [0, 128], sizes = [8, 64], strides = [1, 1]} : vector<8x192xf32> to vector<8x64xf32>
    %94 = arith.mulf %91, %73 : vector<8x64xf32>
    %95 = arith.addf %93, %94 : vector<8x64xf32>
    %96 = math.tanh %95 : vector<8x64xf32>
    %cst_34 = arith.constant 1.000000e+00 : f32
    %97 = vector.broadcast %cst_34 : f32 to vector<8x64xf32>
    %98 = arith.subf %97, %92 : vector<8x64xf32>
    %99 = arith.mulf %98, %96 : vector<8x64xf32>
    %100 = arith.truncf %99 : vector<8x64xf32> to vector<8x64xbf16>
    %cst_35 = arith.constant dense<0.000000e+00> : vector<8x192xf32>
    %101 = tpu.matmul %100, %70, %cst_35 {dimension_numbers = #tpu.dot_dimension_numbers<[1], [0], [0], [1], [0, 0, 1, 1], [], []>} : vector<8x64xbf16>, vector<64x192xbf16>, vector<8x192xf32> -> vector<8x192xf32>
    %102 = vector.extract_strided_slice %84 {offsets = [0, 0], sizes = [8, 128], strides = [1, 1]} : vector<8x192xf32> to vector<8x128xf32>
    %103 = vector.extract_strided_slice %101 {offsets = [0, 0], sizes = [8, 128], strides = [1, 1]} : vector<8x192xf32> to vector<8x128xf32>
    %104 = arith.addf %102, %103 : vector<8x128xf32>
    %105 = arith.negf %104 : vector<8x128xf32>
    %106 = math.exp %105 : vector<8x128xf32>
    %cst_36 = arith.constant 1.000000e+00 : f32
    %107 = vector.broadcast %cst_36 : f32 to vector<8x128xf32>
    %108 = arith.addf %107, %106 : vector<8x128xf32>
    %109 = arith.divf %107, %108 : vector<8x128xf32>
    %110 = vector.extract_strided_slice %109 {offsets = [0, 0], sizes = [8, 64], strides = [1, 1]} : vector<8x128xf32> to vector<8x64xf32>
    %111 = vector.extract_strided_slice %109 {offsets = [0, 64], sizes = [8, 64], strides = [1, 1]} : vector<8x128xf32> to vector<8x64xf32>
    %112 = vector.extract_strided_slice %84 {offsets = [0, 128], sizes = [8, 64], strides = [1, 1]} : vector<8x192xf32> to vector<8x64xf32>
    %113 = vector.extract_strided_slice %101 {offsets = [0, 128], sizes = [8, 64], strides = [1, 1]} : vector<8x192xf32> to vector<8x64xf32>
    %114 = arith.addf %113, %73 : vector<8x64xf32>
    %115 = arith.mulf %110, %114 : vector<8x64xf32>
    %116 = arith.addf %112, %115 : vector<8x64xf32>
    %117 = math.tanh %116 : vector<8x64xf32>
    %cst_37 = arith.constant 1.000000e+00 : f32
    %118 = vector.broadcast %cst_37 : f32 to vector<8x64xf32>
    %119 = arith.subf %118, %111 : vector<8x64xf32>
    %120 = arith.mulf %119, %117 : vector<8x64xf32>
    %121 = arith.mulf %111, %99 : vector<8x64xf32>
    %122 = arith.addf %120, %121 : vector<8x64xf32>
    %123 = arith.subf %99, %122 : vector<8x64xf32>
    %124 = vector.broadcast %9 : vector<1x64xf32> to vector<8x64xf32>
    %125 = arith.mulf %124, %123 : vector<8x64xf32>
    %126 = arith.addf %122, %125 : vector<8x64xf32>
    %127 = arith.subf %122, %99 : vector<8x64xf32>
    %128 = vector.broadcast %9 : vector<1x64xf32> to vector<8x64xf32>
    %129 = arith.mulf %128, %127 : vector<8x64xf32>
    %130 = arith.addf %99, %129 : vector<8x64xf32>
    %131 = vector.extract_strided_slice %126 {offsets = [0, 0], sizes = [8, 32], strides = [1, 1]} : vector<8x64xf32> to vector<8x32xf32>
    %132 = vector.extract_strided_slice %126 {offsets = [0, 32], sizes = [8, 32], strides = [1, 1]} : vector<8x64xf32> to vector<8x32xf32>
    %133 = arith.addf %131, %132 : vector<8x32xf32>
    %134 = vector.extract_strided_slice %130 {offsets = [0, 0], sizes = [8, 32], strides = [1, 1]} : vector<8x64xf32> to vector<8x32xf32>
    %135 = vector.extract_strided_slice %130 {offsets = [0, 32], sizes = [8, 32], strides = [1, 1]} : vector<8x64xf32> to vector<8x32xf32>
    %136 = arith.addf %134, %135 : vector<8x32xf32>
    %c0_38 = arith.constant 0 : index
    %c0_39 = arith.constant 0 : index
    %137 = vector.load %arg12[%c0_38, %c0_39] : memref<1x32xf32, #tpu.memory_space<vmem>>, vector<1x32xf32>
    %138 = math.tanh %133 : vector<8x32xf32>
    %139 = vector.broadcast %137 : vector<1x32xf32> to vector<8x32xf32>
    %140 = arith.mulf %138, %139 : vector<8x32xf32>
    %cst_40 = arith.constant dense<0.000000e+00> : vector<8xf32>
    %141 = vector.multi_reduction <add>, %140, %cst_40 [1] : vector<8x32xf32> to vector<8xf32>
    %142 = vector.shape_cast %141 : vector<8xf32> to vector<8x1xf32>
    %143 = math.tanh %136 : vector<8x32xf32>
    %144 = vector.broadcast %137 : vector<1x32xf32> to vector<8x32xf32>
    %145 = arith.mulf %143, %144 : vector<8x32xf32>
    %cst_41 = arith.constant dense<0.000000e+00> : vector<8xf32>
    %146 = vector.multi_reduction <add>, %145, %cst_41 [1] : vector<8x32xf32> to vector<8xf32>
    %147 = vector.shape_cast %146 : vector<8xf32> to vector<8x1xf32>
    %148 = arith.maximumf %142, %147 : vector<8x1xf32>
    %149 = arith.subf %142, %148 : vector<8x1xf32>
    %150 = math.exp %149 : vector<8x1xf32>
    %151 = arith.subf %147, %148 : vector<8x1xf32>
    %152 = math.exp %151 : vector<8x1xf32>
    %153 = arith.addf %150, %152 : vector<8x1xf32>
    %154 = tpu.reciprocal %153 {approx = true} : vector<8x1xf32> -> vector<8x1xf32>
    %155 = arith.mulf %150, %154 : vector<8x1xf32>
    %156 = vector.broadcast %155 : vector<8x1xf32> to vector<8x32xf32>
    %157 = arith.mulf %156, %133 : vector<8x32xf32>
    %158 = arith.mulf %152, %154 : vector<8x1xf32>
    %159 = vector.broadcast %158 : vector<8x1xf32> to vector<8x32xf32>
    %160 = arith.mulf %159, %136 : vector<8x32xf32>
    %161 = arith.addf %157, %160 : vector<8x32xf32>
    %c0_42 = arith.constant 0 : index
    %c0_43 = arith.constant 0 : index
    %162 = vector.load %arg3[%c0_42, %c0_43] : memref<4x8xf32, #tpu.memory_space<vmem>>, vector<4x8xf32>
    %cst_44 = arith.constant dense<0.000000e+00> : vector<4x32xf32>
    %163 = tpu.matmul %162, %161, %cst_44 {dimension_numbers = #tpu.dot_dimension_numbers<[1], [0], [0], [1], [0, 0, 1, 1], [], []>} : vector<4x8xf32>, vector<8x32xf32>, vector<4x32xf32> -> vector<4x32xf32>
    %164 = math.tanh %163 : vector<4x32xf32>
    %c0_45 = arith.constant 0 : index
    %c0_46 = arith.constant 0 : index
    %165 = vector.load %arg13[%c0_45, %c0_46] : memref<4x32xf32, #tpu.memory_space<vmem>>, vector<4x32xf32>
    tpu.vector_store %arg13[%c0_45, %c0_46], %164 {strides = array<i32>} : memref<4x32xf32, #tpu.memory_space<vmem>>, vector<4x32xf32>,
    return
  }
}

</mosaic_0001>

<llo_original>
// kernel: rnn_module_forward.1
$region0: #{rnn_module_forward.1}
  #allocation0 [shape = 'u32[]', space=smem, size = 0x4, offset = 0x4, fixed_abs, tag = 'smem constant byte address 0x4 - core index']
  #allocation1 [shape = 'u32[144,128]{1,0:T(1,128)}', space=vmem, size = 0x12000, scoped, tag = 'internal scratch']
  %s0 = inlined_call_operand.vmem [shape: f32[8,16,256], index: 0, kind: input, shape index: {}]
  %s1 = inlined_call_operand.vmem [shape: f32[8,192], index: 1, kind: input, shape index: {}]
  %s2 = inlined_call_operand.vmem [shape: f32[8,8], index: 2, kind: input, shape index: {}]
  %s3 = inlined_call_operand.vmem [shape: f32[4,8], index: 3, kind: input, shape index: {}]
  %s4 = inlined_call_operand.vmem [shape: bf16[16,192], index: 4, kind: input, shape index: {}]
  %s5 = inlined_call_operand.vmem [shape: f32[1,192], index: 5, kind: input, shape index: {}]
  %s6 = inlined_call_operand.vmem [shape: bf16[64,192], index: 6, kind: input, shape index: {}]
  %s7 = inlined_call_operand.vmem [shape: f32[1,64], index: 7, kind: input, shape index: {}]
  %s8 = inlined_call_operand.vmem [shape: bf16[64,192], index: 8, kind: input, shape index: {}]
  %s9 = inlined_call_operand.vmem [shape: f32[1,192], index: 9, kind: input, shape index: {}]
  %s10 = inlined_call_operand.vmem [shape: bf16[64,192], index: 10, kind: input, shape index: {}]
  %s11 = inlined_call_operand.vmem [shape: f32[1,64], index: 11, kind: input, shape index: {}]
  %s12 = inlined_call_operand.vmem [shape: f32[1,32], index: 12, kind: input, shape index: {}]
  %s13 = inlined_call_operand.hbm [shape: f32[4,32], index: 13, kind: output, shape index: {}]
  %s14 = sld [smem:[#allocation0]]
  $region62: #{rnn_module_forward.1} parent=0
    _
  %s16 = ssub.s32 1, %s14
  %s17 = scalar_select 0, %s16, %s14
  $region1: #{rnn_module_forward.1} parent=0
    #allocation2 [shape = 'u8[2048]{0}', space=vmem, size = 0x800, scoped, tag = 'output window, operand 0, single buffered']
    #allocation3 [shape = 's32[1]{0}', space=sflag, size = 0x4, scoped, tag = 'scoped memory for rnn_module_forward.1']
    %18 = vsyncpa [#allocation3], 0
    // Predicated region
    $region2: #{rnn_module_forward.1} parent=1 // pred_check
      _
    $region3: #{rnn_module_forward.1} parent=1 // pred_check_branch
      %20 = sbr.rel (0) target = $region5
    $region4: #{rnn_module_forward.1} parent=1 // pred_region
      _
    $region5: #{rnn_module_forward.1} parent=1 // pred_fallthru
      _
    // Predicated region
    $region6: #{rnn_module_forward.1} parent=1 // pred_check
      _
    $region7: #{rnn_module_forward.1} parent=1 // pred_check_branch
      %22 = sbr.rel (0) target = $region9
    $region8: #{rnn_module_forward.1} parent=1 // pred_region
      _
    $region9: #{rnn_module_forward.1} parent=1 // pred_fallthru
      _
    // Predicated region
    $region10: #{rnn_module_forward.1} parent=1 // pred_check
      _
    $region11: #{rnn_module_forward.1} parent=1 // pred_check_branch
      %24 = sbr.rel (0) target = $region13
    $region12: #{rnn_module_forward.1} parent=1 // pred_region
      _
    $region13: #{rnn_module_forward.1} parent=1 // pred_fallthru
      _
    // Predicated region
    $region14: #{rnn_module_forward.1} parent=1 // pred_check
      _
    $region15: #{rnn_module_forward.1} parent=1 // pred_check_branch
      %26 = sbr.rel (0) target = $region17
    $region16: #{rnn_module_forward.1} parent=1 // pred_region
      _
    $region17: #{rnn_module_forward.1} parent=1 // pred_fallthru
      _
    // Predicated region
    $region18: #{rnn_module_forward.1} parent=1 // pred_check
      _
    $region19: #{rnn_module_forward.1} parent=1 // pred_check_branch
      %28 = sbr.rel (0) target = $region21
    $region20: #{rnn_module_forward.1} parent=1 // pred_region
      _
    $region21: #{rnn_module_forward.1} parent=1 // pred_fallthru
      _
    // Predicated region
    $region22: #{rnn_module_forward.1} parent=1 // pred_check
      _
    $region23: #{rnn_module_forward.1} parent=1 // pred_check_branch
      %30 = sbr.rel (0) target = $region25
    $region24: #{rnn_module_forward.1} parent=1 // pred_region
      _
    $region25: #{rnn_module_forward.1} parent=1 // pred_fallthru
      _
    // Predicated region
    $region26: #{rnn_module_forward.1} parent=1 // pred_check
      _
    $region27: #{rnn_module_forward.1} parent=1 // pred_check_branch
      %32 = sbr.rel (0) target = $region29
    $region28: #{rnn_module_forward.1} parent=1 // pred_region
      _
    $region29: #{rnn_module_forward.1} parent=1 // pred_fallthru
      _
    // Predicated region
    $region30: #{rnn_module_forward.1} parent=1 // pred_check
      _
    $region31: #{rnn_module_forward.1} parent=1 // pred_check_branch
      %34 = sbr.rel (0) target = $region33
    $region32: #{rnn_module_forward.1} parent=1 // pred_region
      _
    $region33: #{rnn_module_forward.1} parent=1 // pred_fallthru
      _
    // Predicated region
    $region34: #{rnn_module_forward.1} parent=1 // pred_check
      _
    $region35: #{rnn_module_forward.1} parent=1 // pred_check_branch
      %36 = sbr.rel (0) target = $region37
    $region36: #{rnn_module_forward.1} parent=1 // pred_region
      _
    $region37: #{rnn_module_forward.1} parent=1 // pred_fallthru
      _
    // Predicated region
    $region38: #{rnn_module_forward.1} parent=1 // pred_check
      _
    $region39: #{rnn_module_forward.1} parent=1 // pred_check_branch
      %38 = sbr.rel (0) target = $region41
    $region40: #{rnn_module_forward.1} parent=1 // pred_region
      _
    $region41: #{rnn_module_forward.1} parent=1 // pred_fallthru
      _
    // Predicated region
    $region42: #{rnn_module_forward.1} parent=1 // pred_check
      _
    $region43: #{rnn_module_forward.1} parent=1 // pred_check_branch
      %40 = sbr.rel (0) target = $region45
    $region44: #{rnn_module_forward.1} parent=1 // pred_region
      _
    $region45: #{rnn_module_forward.1} parent=1 // pred_fallthru
      _
    // Predicated region
    $region46: #{rnn_module_forward.1} parent=1 // pred_check
      _
    $region47: #{rnn_module_forward.1} parent=1 // pred_check_branch
      %42 = sbr.rel (0) target = $region49
    $region48: #{rnn_module_forward.1} parent=1 // pred_region
      _
    $region49: #{rnn_module_forward.1} parent=1 // pred_fallthru
      _
    // Predicated region
    $region50: #{rnn_module_forward.1} parent=1 // pred_check
      _
    $region51: #{rnn_module_forward.1} parent=1 // pred_check_branch
      %44 = sbr.rel (0) target = $region53
    $region52: #{rnn_module_forward.1} parent=1 // pred_region
      _
    $region53: #{rnn_module_forward.1} parent=1 // pred_fallthru
      _
    %v46 = vld [vmem:[%s0] sm:$0xff]
    %v47 = vld [vmem:[%s0 + $0x8] sm:$0xff]
    %v48 = vld [vmem:[%s0 + $0x10] sm:$0xff]
    %v49 = vld [vmem:[%s0 + $0x18] sm:$0xff]
    %v50 = vld [vmem:[%s0 + $0x20] sm:$0xff]
    %v51 = vld [vmem:[%s0 + $0x28] sm:$0xff]
    %v52 = vld [vmem:[%s0 + $0x30] sm:$0xff]
    %v53 = vld [vmem:[%s0 + $0x38] sm:$0xff]
    %v54 = vld [vmem:[%s0 + $0x40] sm:$0xff]
    %v55 = vld [vmem:[%s0 + $0x48] sm:$0xff]
    %v56 = vld [vmem:[%s0 + $0x50] sm:$0xff]
    %v57 = vld [vmem:[%s0 + $0x58] sm:$0xff]
    %v58 = vld [vmem:[%s0 + $0x60] sm:$0xff]
    %v59 = vld [vmem:[%s0 + $0x68] sm:$0xff]
    %v60 = vld [vmem:[%s0 + $0x70] sm:$0xff]
    %v61 = vld [vmem:[%s0 + $0x78] sm:$0xff]
    %v62 = vld [vmem:[%s0 + $0x80] sm:$0xff]
    %v63 = vld [vmem:[%s0 + $0x88] sm:$0xff]
    %v64 = vld [vmem:[%s0 + $0x90] sm:$0xff]
    %v65 = vld [vmem:[%s0 + $0x98] sm:$0xff]
    %v66 = vld [vmem:[%s0 + $0xa0] sm:$0xff]
    %v67 = vld [vmem:[%s0 + $0xa8] sm:$0xff]
    %v68 = vld [vmem:[%s0 + $0xb0] sm:$0xff]
    %v69 = vld [vmem:[%s0 + $0xb8] sm:$0xff]
    %v70 = vld [vmem:[%s0 + $0xc0] sm:$0xff]
    %v71 = vld [vmem:[%s0 + $0xc8] sm:$0xff]
    %v72 = vld [vmem:[%s0 + $0xd0] sm:$0xff]
    %v73 = vld [vmem:[%s0 + $0xd8] sm:$0xff]
    %v74 = vld [vmem:[%s0 + $0xe0] sm:$0xff]
    %v75 = vld [vmem:[%s0 + $0xe8] sm:$0xff]
    %v76 = vld [vmem:[%s0 + $0xf0] sm:$0xff]
    %v77 = vld [vmem:[%s0 + $0xf8] sm:$0xff]
    %v78 = vmax.f32 %v46, 0.0
    %v79 = vmax.f32 %v47, 0.0
    %v80 = vmax.f32 %v48, 0.0
    %v81 = vmax.f32 %v49, 0.0
    %v82 = vmax.f32 %v50, 0.0
    %v83 = vmax.f32 %v51, 0.0
    %v84 = vmax.f32 %v52, 0.0
    %v85 = vmax.f32 %v53, 0.0
    %v86 = vmax.f32 %v54, 0.0
    %v87 = vmax.f32 %v55, 0.0
    %v88 = vmax.f32 %v56, 0.0
    %v89 = vmax.f32 %v57, 0.0
    %v90 = vmax.f32 %v58, 0.0
    %v91 = vmax.f32 %v59, 0.0
    %v92 = vmax.f32 %v60, 0.0
    %v93 = vmax.f32 %v61, 0.0
    %v94 = vmax.f32 %v62, 0.0
    %v95 = vmax.f32 %v63, 0.0
    %v96 = vmax.f32 %v64, 0.0
    %v97 = vmax.f32 %v65, 0.0
    %v98 = vmax.f32 %v66, 0.0
    %v99 = vmax.f32 %v67, 0.0
    %v100 = vmax.f32 %v68, 0.0
    %v101 = vmax.f32 %v69, 0.0
    %v102 = vmax.f32 %v70, 0.0
    %v103 = vmax.f32 %v71, 0.0
    %v104 = vmax.f32 %v72, 0.0
    %v105 = vmax.f32 %v73, 0.0
    %v106 = vmax.f32 %v74, 0.0
    %v107 = vmax.f32 %v75, 0.0
    %v108 = vmax.f32 %v76, 0.0
    %v109 = vmax.f32 %v77, 0.0
    %v110 = vadd.f32 %v78, %v79
    %111 = vadd.xlane.f32.xlu0 %v110
    %v112 = vpop.xlane.xlu0 %111
    %v113 = vadd.f32 %v80, %v81
    %114 = vadd.xlane.f32.xlu0 %v113
    %v115 = vpop.xlane.xlu0 %114
    %v116 = vadd.f32 %v82, %v83
    %117 = vadd.xlane.f32.xlu0 %v116
    %v118 = vpop.xlane.xlu0 %117
    %v119 = vadd.f32 %v84, %v85
    %120 = vadd.xlane.f32.xlu0 %v119
    %v121 = vpop.xlane.xlu0 %120
    %v122 = vadd.f32 %v86, %v87
    %123 = vadd.xlane.f32.xlu0 %v122
    %v124 = vpop.xlane.xlu0 %123
    %v125 = vadd.f32 %v88, %v89
    %126 = vadd.xlane.f32.xlu0 %v125
    %v127 = vpop.xlane.xlu0 %126
    %v128 = vadd.f32 %v90, %v91
    %129 = vadd.xlane.f32.xlu0 %v128
    %v130 = vpop.xlane.xlu0 %129
    %v131 = vadd.f32 %v92, %v93
    %132 = vadd.xlane.f32.xlu0 %v131
    %v133 = vpop.xlane.xlu0 %132
    %v134 = vadd.f32 %v94, %v95
    %135 = vadd.xlane.f32.xlu0 %v134
    %v136 = vpop.xlane.xlu0 %135
    %v137 = vadd.f32 %v96, %v97
    %138 = vadd.xlane.f32.xlu0 %v137
    %v139 = vpop.xlane.xlu0 %138
    %v140 = vadd.f32 %v98, %v99
    %141 = vadd.xlane.f32.xlu0 %v140
    %v142 = vpop.xlane.xlu0 %141
    %v143 = vadd.f32 %v100, %v101
    %144 = vadd.xlane.f32.xlu0 %v143
    %v145 = vpop.xlane.xlu0 %144
    %v146 = vadd.f32 %v102, %v103
    %147 = vadd.xlane.f32.xlu0 %v146
    %v148 = vpop.xlane.xlu0 %147
    %v149 = vadd.f32 %v104, %v105
    %150 = vadd.xlane.f32.xlu0 %v149
    %v151 = vpop.xlane.xlu0 %150
    %v152 = vadd.f32 %v106, %v107
    %153 = vadd.xlane.f32.xlu0 %v152
    %v154 = vpop.xlane.xlu0 %153
    %v155 = vadd.f32 %v108, %v109
    %156 = vadd.xlane.f32.xlu0 %v155
    %v157 = vpop.xlane.xlu0 %156
    %v158 = vmul.f32 %v112, 0.00390625
    %v159 = vmul.f32 %v115, 0.00390625
    %v160 = vmul.f32 %v118, 0.00390625
    %v161 = vmul.f32 %v121, 0.00390625
    %v162 = vmul.f32 %v124, 0.00390625
    %v163 = vmul.f32 %v127, 0.00390625
    %v164 = vmul.f32 %v130, 0.00390625
    %v165 = vmul.f32 %v133, 0.00390625
    %v166 = vmul.f32 %v136, 0.00390625
    %v167 = vmul.f32 %v139, 0.00390625
    %v168 = vmul.f32 %v142, 0.00390625
    %v169 = vmul.f32 %v145, 0.00390625
    %v170 = vmul.f32 %v148, 0.00390625
    %v171 = vmul.f32 %v151, 0.00390625
    %v172 = vmul.f32 %v154, 0.00390625
    %v173 = vmul.f32 %v157, 0.00390625
    %v174 = vld [vmem:[%s1] sm:$0xff]
    %v175 = vld [vmem:[%s1 + $0x8] sm:$0xff]
    %v176 = vld [vmem:[%s2] sm:$0xff]
    %v177 = vld [vmem:[%s4] sm:$0xff]
    %v178 = vld [vmem:[%s4 + $0x8] sm:$0xff]
    %v179 = vld [vmem:[%s5] sm:$0x3]
    %v180 = vld [vmem:[%s6] sm:$0xff]
    %v181 = vld [vmem:[%s6 + $0x8] sm:$0xff]
    %v182 = vld [vmem:[%s6 + $0x10] sm:$0xff]
    %v183 = vld [vmem:[%s6 + $0x18] sm:$0xff]
    %v184 = vld [vmem:[%s6 + $0x20] sm:$0xff]
    %v185 = vld [vmem:[%s6 + $0x28] sm:$0xff]
    %v186 = vld [vmem:[%s6 + $0x30] sm:$0xff]
    %v187 = vld [vmem:[%s6 + $0x38] sm:$0xff]
    %v188 = vld [vmem:[%s7] sm:$0x1]
    %v190 = vlaneseq
    %v191 = vshrl.u32 %v190, 7
    %v192 = vsub.s32 0, %v191
    %v193 = vrot.slane %v188, %v192
    %v195 = vpack.c.bf16 %v159, %v158
    %v196 = vpack.c.bf16 %v161, %v160
    %v197 = vpack.c.bf16 %v163, %v162
    %v198 = vpack.c.bf16 %v165, %v164
    %v199 = vpack.c.bf16 %v167, %v166
    %v200 = vpack.c.bf16 %v169, %v168
    %v201 = vpack.c.bf16 %v171, %v170
    %v202 = vpack.c.bf16 %v173, %v172
    %v204 = vlaneseq
    %v205 = vshrl.u32 %v204, 7
    %v206 = vsub.s32 0, %v205
    %v207 = vrot.slane %v179, %v206
    %v208 = vlaneseq
    %v209 = vshrl.u32 %v208, 7
    %v210 = vsub.s32 1, %v209
    %v211 = vrot.slane %v179, %v210
    %v222 = vunpack.c.l.b16 %v195
    %v223 = vunpack.c.h.b16 %v195
    %v224 = vunpack.c.l.b16 %v196
    %v225 = vunpack.c.h.b16 %v196
    %v226 = vunpack.c.l.b16 %v197
    %v227 = vunpack.c.h.b16 %v197
    %v228 = vunpack.c.l.b16 %v198
    %v229 = vunpack.c.h.b16 %v198
    %v230 = vunpack.c.l.b16 %v199
    %v231 = vunpack.c.h.b16 %v199
    %v232 = vunpack.c.l.b16 %v200
    %v233 = vunpack.c.h.b16 %v200
    %v234 = vunpack.c.l.b16 %v201
    %v235 = vunpack.c.h.b16 %v201
    %v236 = vunpack.c.l.b16 %v202
    %v237 = vunpack.c.h.b16 %v202
    %v238 = vlaneseq
    %v239 = vand.u32 %v238, 127
    %v240 = vlaneseq
    %v241 = vshrl.u32 %v240, 7
    %v242 = vsub.s32 %v239, %v241
    %v243 = vrot.slane %v222, %v242
    %v244 = vadd.s32 %v239, 4294967288
    %v245 = vlaneseq
    %v246 = vshrl.u32 %v245, 7
    %v247 = vsub.s32 %v244, %v246
    %v248 = vrot.slane %v223, %v247
    %vm249 = vcmask 130112
    %v250 = vsel %vm249, %v248, %v243
    %v251 = vlaneseq
    %v252 = vshrl.u32 %v251, 7
    %v253 = vsub.s32 %v239, %v252
    %v254 = vrot.slane %v224, %v253
    %v255 = vlaneseq
    %v256 = vshrl.u32 %v255, 7
    %v257 = vsub.s32 %v244, %v256
    %v258 = vrot.slane %v225, %v257
    %v259 = vsel %vm249, %v258, %v254
    %v260 = vlaneseq
    %v261 = vshrl.u32 %v260, 7
    %v262 = vsub.s32 %v239, %v261
    %v263 = vrot.slane %v226, %v262
    %v264 = vlaneseq
    %v265 = vshrl.u32 %v264, 7
    %v266 = vsub.s32 %v244, %v265
    %v267 = vrot.slane %v227, %v266
    %v268 = vsel %vm249, %v267, %v263
    %v269 = vlaneseq
    %v270 = vshrl.u32 %v269, 7
    %v271 = vsub.s32 %v239, %v270
    %v272 = vrot.slane %v228, %v271
    %v273 = vlaneseq
    %v274 = vshrl.u32 %v273, 7
    %v275 = vsub.s32 %v244, %v274
    %v276 = vrot.slane %v229, %v275
    %v277 = vsel %vm249, %v276, %v272
    %v278 = vlaneseq
    %v279 = vshrl.u32 %v278, 7
    %v280 = vsub.s32 %v239, %v279
    %v281 = vrot.slane %v230, %v280
    %v282 = vlaneseq
    %v283 = vshrl.u32 %v282, 7
    %v284 = vsub.s32 %v244, %v283
    %v285 = vrot.slane %v231, %v284
    %v286 = vsel %vm249, %v285, %v281
    %v287 = vlaneseq
    %v288 = vshrl.u32 %v287, 7
    %v289 = vsub.s32 %v239, %v288
    %v290 = vrot.slane %v232, %v289
    %v291 = vlaneseq
    %v292 = vshrl.u32 %v291, 7
    %v293 = vsub.s32 %v244, %v292
    %v294 = vrot.slane %v233, %v293
    %v295 = vsel %vm249, %v294, %v290
    %v296 = vlaneseq
    %v297 = vshrl.u32 %v296, 7
    %v298 = vsub.s32 %v239, %v297
    %v299 = vrot.slane %v234, %v298
    %v300 = vlaneseq
    %v301 = vshrl.u32 %v300, 7
    %v302 = vsub.s32 %v244, %v301
    %v303 = vrot.slane %v235, %v302
    %v304 = vsel %vm249, %v303, %v299
    %v305 = vlaneseq
    %v306 = vshrl.u32 %v305, 7
    %v307 = vsub.s32 %v239, %v306
    %v308 = vrot.slane %v236, %v307
    %v309 = vlaneseq
    %v310 = vshrl.u32 %v309, 7
    %v311 = vsub.s32 %v244, %v310
    %v312 = vrot.slane %v237, %v311
    %v313 = vsel %vm249, %v312, %v308
    %vm314 = vcmask 1041409
    %v315 = vsel %vm314, %v259, %v250
    %vm316 = vcmask 1042434
    %v317 = vsel %vm316, %v268, %v315
    %vm318 = vcmask 1043459
    %v319 = vsel %vm318, %v277, %v317
    %vm320 = vcmask 1044484
    %v321 = vsel %vm320, %v286, %v319
    %vm322 = vcmask 1045509
    %v323 = vsel %vm322, %v295, %v321
    %vm324 = vcmask 1046534
    %v325 = vsel %vm324, %v304, %v323
    %vm326 = vcmask 1047559
    %v327 = vsel %vm326, %v313, %v325
    %v328 = vpack.c.b16 %v327, %v327
    %v331 = vunpack.c.l.b16 %v177
    %v332 = vunpack.c.h.b16 %v177
    %v333 = vunpack.c.l.b16 %v178
    %v334 = vunpack.c.h.b16 %v178
    %v335 = vpack.c.b16 %v333, %v331
    %v336 = vpack.c.b16 %v334, %v332
    %vm339 = vcmask 130048
    %v341 = vsel %vm339, %v328, 0
    %343 = vmatprep.subr.bf16.mxu0 %v336
    %344 = vmatpush1.bf16.msra.mxu0 %v335
    %345 = vmatprep.subr.bf16.mxu0 0
    %346 = vmatpush1.bf16.msra.mxu0 0
    %347 = vmatprep.subr.bf16.mxu0 0
    %348 = vmatpush1.bf16.msra.mxu0 0
    %349 = vmatprep.subr.bf16.mxu0 0
    %350 = vmatpush1.bf16.msra.mxu0 0
    %351 = vmatprep.subr.bf16.mxu0 0
    %352 = vmatpush1.bf16.msra.mxu0 0
    %353 = vmatprep.subr.bf16.mxu0 0
    %354 = vmatpush1.bf16.msra.mxu0 0
    %355 = vmatprep.subr.bf16.mxu0 0
    %356 = vmatpush1.bf16.msra.mxu0 0
    %357 = vmatprep.subr.bf16.mxu0 0
    %358 = vmatpush1.bf16.msra.mxu0 0
    %359 = vmatprep.subr.bf16.mxu0 0
    %360 = vmatpush1.bf16.msra.mxu0 0
    %361 = vmatprep.subr.bf16.mxu0 0
    %362 = vmatpush1.bf16.msra.mxu0 0
    %363 = vmatprep.subr.bf16.mxu0 0
    %364 = vmatpush1.bf16.msra.mxu0 0
    %365 = vmatprep.subr.bf16.mxu0 0
    %366 = vmatpush1.bf16.msra.mxu0 0
    %367 = vmatprep.subr.bf16.mxu0 0
    %368 = vmatpush1.bf16.msra.mxu0 0
    %369 = vmatprep.subr.bf16.mxu0 0
    %370 = vmatpush1.bf16.msra.mxu0 0
    %371 = vmatprep.subr.bf16.mxu0 0
    %372 = vmatpush1.bf16.msra.mxu0 0
    %373 = vmatprep.subr.bf16.mxu0 0
    %374 = vmatpush1.bf16.msra.mxu0 0
    %375 = vmatprep.mubr.bf16.mxu0 0
    %376 = vmatmul.mubr.bf16.gmra.mrb[0].mxu0 %v341
    %v377 = vpop.f32.mrb[0].mxu0
    %v378 = vadd.f32 %v207, %v377
    %v379 = vpop.f32.mrb[0].mxu0
    %v380 = vadd.f32 %v211, %v379
    %v381 = vpop.f32.mrb[0].mxu0
    %v382 = vpop.f32.mrb[0].mxu0
    %383 = vdwg.mxu0
    %vm384 = vcmask 64512
    %v386 = vsel %vm384, %v176, 0
    %388 = vmatprep.subr.mxu0 %v380
    %389 = vmatpush1.msra.mxu0 %v378
    %390 = vmatprep.subr.mxu0 0.0
    %391 = vmatpush1.msra.mxu0 0.0
    %392 = vmatprep.subr.mxu0 0.0
    %393 = vmatpush1.msra.mxu0 0.0
    %394 = vmatprep.subr.mxu0 0.0
    %395 = vmatpush1.msra.mxu0 0.0
    %396 = vmatprep.subr.mxu0 0.0
    %397 = vmatpush1.msra.mxu0 0.0
    %398 = vmatprep.subr.mxu0 0.0
    %399 = vmatpush1.msra.mxu0 0.0
    %400 = vmatprep.subr.mxu0 0.0
    %401 = vmatpush1.msra.mxu0 0.0
    %402 = vmatprep.subr.mxu0 0.0
    %403 = vmatpush1.msra.mxu0 0.0
    %404 = vmatprep.subr.mxu0 0.0
    %405 = vmatpush1.msra.mxu0 0.0
    %406 = vmatprep.subr.mxu0 0.0
    %407 = vmatpush1.msra.mxu0 0.0
    %408 = vmatprep.subr.mxu0 0.0
    %409 = vmatpush1.msra.mxu0 0.0
    %410 = vmatprep.subr.mxu0 0.0
    %411 = vmatpush1.msra.mxu0 0.0
    %412 = vmatprep.subr.mxu0 0.0
    %413 = vmatpush1.msra.mxu0 0.0
    %414 = vmatprep.subr.mxu0 0.0
    %415 = vmatpush1.msra.mxu0 0.0
    %416 = vmatprep.subr.mxu0 0.0
    %417 = vmatpush1.msra.mxu0 0.0
    %418 = vmatprep.subr.mxu0 0.0
    %419 = vmatpush1.msra.mxu0 0.0
    %420 = vmatprep.subr.mxu0 0.0
    %421 = vmatpush1.msra.mxu0 0.0
    %422 = vmatprep.subr.mxu0 0.0
    %423 = vmatpush1.msra.mxu0 0.0
    %424 = vmatprep.subr.mxu0 0.0
    %425 = vmatpush1.msra.mxu0 0.0
    %426 = vmatprep.subr.mxu0 0.0
    %427 = vmatpush1.msra.mxu0 0.0
    %428 = vmatprep.subr.mxu0 0.0
    %429 = vmatpush1.msra.mxu0 0.0
    %430 = vmatprep.subr.mxu0 0.0
    %431 = vmatpush1.msra.mxu0 0.0
    %432 = vmatprep.subr.mxu0 0.0
    %433 = vmatpush1.msra.mxu0 0.0
    %434 = vmatprep.subr.mxu0 0.0
    %435 = vmatpush1.msra.mxu0 0.0
    %436 = vmatprep.subr.mxu0 0.0
    %437 = vmatpush1.msra.mxu0 0.0
    %438 = vmatprep.subr.mxu0 0.0
    %439 = vmatpush1.msra.mxu0 0.0
    %440 = vmatprep.subr.mxu0 0.0
    %441 = vmatpush1.msra.mxu0 0.0
    %442 = vmatprep.subr.mxu0 0.0
    %443 = vmatpush1.msra.mxu0 0.0
    %444 = vmatprep.subr.mxu0 0.0
    %445 = vmatpush1.msra.mxu0 0.0
    %446 = vmatprep.subr.mxu0 0.0
    %447 = vmatpush1.msra.mxu0 0.0
    %448 = vmatprep.subr.mxu0 0.0
    %449 = vmatpush1.msra.mxu0 0.0
    %450 = vmatprep.subr.mxu0 0.0
    %451 = vmatpush1.msra.mxu0 0.0
    %452 = vmatprep.mubr.f32.mxu0 0.0
    %453 = vmatmul.mubr.f32.gmra.mrb[0].mxu0 %v386
    %v454 = vpop.f32.mrb[0].mxu0
    %v455 = vadd.f32 0.0, %v454
    %v456 = vpop.f32.mrb[0].mxu0
    %v457 = vadd.f32 0.0, %v456
    %458 = vdwg.mxu0
    %v459 = vsub.f32 %v378, %v455
    %v460 = vsub.f32 %v380, %v457
    %v461 = vmul.f32 %v174, %v459
    %v462 = vmul.f32 %v175, %v460
    %v463 = vadd.f32 %v455, %v461
    %v464 = vadd.f32 %v457, %v462
    %v465 = vsub.f32 %v455, %v378
    %v466 = vsub.f32 %v457, %v380
    %v467 = vmul.f32 %v174, %v465
    %v468 = vmul.f32 %v175, %v466
    %v469 = vadd.f32 %v378, %v467
    %v470 = vadd.f32 %v380, %v468
    %v471 = vxor.u32 %v463, 2147483648
    %v472 = vmul.f32 %v471, 1.442695
    %v473 = vpow.pop %v472
    %v474 = vadd.f32 %v473, 1.0
    %v475 = vrcp.pop %v474
    %v476 = vmul.f32 1.0, %v475
    %v477 = vmul.f32 %v476, %v193
    %v478 = vadd.f32 %v464, %v477
    %v479 = vtanh.pop %v478
    %v480 = vsub.f32 1.0, %v476
    %482 = vrot.lane.b32.xlu0 %v479, 64
    %v483 = vpop.permute.xlu0 %482
    %v485 = vmul.f32 %v480, %v483
    %v486 = vpack.c.bf16 %v485, %v485
    %488 = vrot.lane.b32.xlu0 %v486, 64
    %v489 = vpop.permute.xlu0 %488
    %v498 = vunpack.c.l.b16 %v180
    %v499 = vunpack.c.h.b16 %v180
    %v500 = vunpack.c.l.b16 %v181
    %v501 = vunpack.c.h.b16 %v181
    %v502 = vunpack.c.l.b16 %v182
    %v503 = vunpack.c.h.b16 %v182
    %v504 = vunpack.c.l.b16 %v183
    %v505 = vunpack.c.h.b16 %v183
    %v506 = vunpack.c.l.b16 %v184
    %v507 = vunpack.c.h.b16 %v184
    %v508 = vunpack.c.l.b16 %v185
    %v509 = vunpack.c.h.b16 %v185
    %v510 = vunpack.c.l.b16 %v186
    %v511 = vunpack.c.h.b16 %v186
    %v512 = vunpack.c.l.b16 %v187
    %v513 = vunpack.c.h.b16 %v187
    %v514 = vpack.c.b16 %v500, %v498
    %v515 = vpack.c.b16 %v501, %v499
    %v516 = vpack.c.b16 %v504, %v502
    %v517 = vpack.c.b16 %v505, %v503
    %v518 = vpack.c.b16 %v508, %v506
    %v519 = vpack.c.b16 %v509, %v507
    %v520 = vpack.c.b16 %v512, %v510
    %v521 = vpack.c.b16 %v513, %v511
    %vm530 = vcmask 523264
    %v532 = vsel %vm530, %v489, 0
    %534 = vmatprep.subr.bf16.mxu0 %v515
    %535 = vmatpush1.bf16.msra.mxu0 %v514
    %536 = vmatprep.subr.bf16.mxu0 %v517
    %537 = vmatpush1.bf16.msra.mxu0 %v516
    %538 = vmatprep.subr.bf16.mxu0 %v519
    %539 = vmatpush1.bf16.msra.mxu0 %v518
    %540 = vmatprep.subr.bf16.mxu0 %v521
    %541 = vmatpush1.bf16.msra.mxu0 %v520
    %542 = vmatprep.subr.bf16.mxu0 0
    %543 = vmatpush1.bf16.msra.mxu0 0
    %544 = vmatprep.subr.bf16.mxu0 0
    %545 = vmatpush1.bf16.msra.mxu0 0
    %546 = vmatprep.subr.bf16.mxu0 0
    %547 = vmatpush1.bf16.msra.mxu0 0
    %548 = vmatprep.subr.bf16.mxu0 0
    %549 = vmatpush1.bf16.msra.mxu0 0
    %550 = vmatprep.subr.bf16.mxu0 0
    %551 = vmatpush1.bf16.msra.mxu0 0
    %552 = vmatprep.subr.bf16.mxu0 0
    %553 = vmatpush1.bf16.msra.mxu0 0
    %554 = vmatprep.subr.bf16.mxu0 0
    %555 = vmatpush1.bf16.msra.mxu0 0
    %556 = vmatprep.subr.bf16.mxu0 0
    %557 = vmatpush1.bf16.msra.mxu0 0
    %558 = vmatprep.subr.bf16.mxu0 0
    %559 = vmatpush1.bf16.msra.mxu0 0
    %560 = vmatprep.subr.bf16.mxu0 0
    %561 = vmatpush1.bf16.msra.mxu0 0
    %562 = vmatprep.subr.bf16.mxu0 0
    %563 = vmatpush1.bf16.msra.mxu0 0
    %564 = vmatprep.subr.bf16.mxu0 0
    %565 = vmatpush1.bf16.msra.mxu0 0
    %566 = vmatprep.mubr.bf16.mxu0 0
    %567 = vmatmul.mubr.bf16.gmra.mrb[0].mxu0 %v532
    %v568 = vpop.f32.mrb[0].mxu0
    %v569 = vadd.f32 0.0, %v568
    %v570 = vpop.f32.mrb[0].mxu0
    %v571 = vadd.f32 0.0, %v570
    %v572 = vpop.f32.mrb[0].mxu0
    %v573 = vpop.f32.mrb[0].mxu0
    %574 = vdwg.mxu0
    %v575 = vadd.f32 %v469, %v569
    %v576 = vxor.u32 %v575, 2147483648
    %v577 = vmul.f32 %v576, 1.442695
    %v578 = vpow.pop %v577
    %v579 = vadd.f32 %v578, 1.0
    %v580 = vrcp.pop %v579
    %v581 = vmul.f32 1.0, %v580
    %v582 = vadd.f32 %v571, %v193
    %v583 = vmul.f32 %v581, %v582
    %v584 = vadd.f32 %v470, %v583
    %v585 = vtanh.pop %v584
    %v586 = vsub.f32 1.0, %v581
    %588 = vrot.lane.b32.xlu0 %v585, 64
    %v589 = vpop.permute.xlu0 %588
    %v591 = vmul.f32 %v586, %v589
    %v592 = vmul.f32 %v581, %v485
    %v593 = vadd.f32 %v591, %v592
    %v594 = vsub.f32 %v485, %v593
    %596 = vrot.lane.b32.xlu0 %v594, 64
    %v597 = vpop.permute.xlu0 %596
    %v599 = vmul.f32 %v174, %v597
    %601 = vrot.lane.b32.xlu0 %v599, 64
    %v602 = vpop.permute.xlu0 %601
    %v604 = vadd.f32 %v593, %v602
    %v605 = vld [vmem:[%s8] sm:$0xff]
    %v606 = vld [vmem:[%s8 + $0x8] sm:$0xff]
    %v607 = vld [vmem:[%s8 + $0x10] sm:$0xff]
    %v608 = vld [vmem:[%s8 + $0x18] sm:$0xff]
    %v609 = vld [vmem:[%s8 + $0x20] sm:$0xff]
    %v610 = vld [vmem:[%s8 + $0x28] sm:$0xff]
    %v611 = vld [vmem:[%s8 + $0x30] sm:$0xff]
    %v612 = vld [vmem:[%s8 + $0x38] sm:$0xff]
    %v613 = vld [vmem:[%s9] sm:$0x3]
    %v614 = vld [vmem:[%s10] sm:$0xff]
    %v615 = vld [vmem:[%s10 + $0x8] sm:$0xff]
    %v616 = vld [vmem:[%s10 + $0x10] sm:$0xff]
    %v617 = vld [vmem:[%s10 + $0x18] sm:$0xff]
    %v618 = vld [vmem:[%s10 + $0x20] sm:$0xff]
    %v619 = vld [vmem:[%s10 + $0x28] sm:$0xff]
    %v620 = vld [vmem:[%s10 + $0x30] sm:$0xff]
    %v621 = vld [vmem:[%s10 + $0x38] sm:$0xff]
    %v622 = vld [vmem:[%s11] sm:$0x1]
    %v624 = vlaneseq
    %v625 = vshrl.u32 %v624, 7
    %v626 = vsub.s32 0, %v625
    %v627 = vrot.slane %v622, %v626
    %v629 = vpack.c.bf16 %v604, %v604
    %v631 = vlaneseq
    %v632 = vshrl.u32 %v631, 7
    %v633 = vsub.s32 0, %v632
    %v634 = vrot.slane %v613, %v633
    %v635 = vlaneseq
    %v636 = vshrl.u32 %v635, 7
    %v637 = vsub.s32 1, %v636
    %v638 = vrot.slane %v613, %v637
    %642 = vrot.lane.b32.xlu0 %v629, 64
    %v643 = vpop.permute.xlu0 %642
    %v652 = vunpack.c.l.b16 %v605
    %v653 = vunpack.c.h.b16 %v605
    %v654 = vunpack.c.l.b16 %v606
    %v655 = vunpack.c.h.b16 %v606
    %v656 = vunpack.c.l.b16 %v607
    %v657 = vunpack.c.h.b16 %v607
    %v658 = vunpack.c.l.b16 %v608
    %v659 = vunpack.c.h.b16 %v608
    %v660 = vunpack.c.l.b16 %v609
    %v661 = vunpack.c.h.b16 %v609
    %v662 = vunpack.c.l.b16 %v610
    %v663 = vunpack.c.h.b16 %v610
    %v664 = vunpack.c.l.b16 %v611
    %v665 = vunpack.c.h.b16 %v611
    %v666 = vunpack.c.l.b16 %v612
    %v667 = vunpack.c.h.b16 %v612
    %v668 = vpack.c.b16 %v654, %v652
    %v669 = vpack.c.b16 %v655, %v653
    %v670 = vpack.c.b16 %v658, %v656
    %v671 = vpack.c.b16 %v659, %v657
    %v672 = vpack.c.b16 %v662, %v660
    %v673 = vpack.c.b16 %v663, %v661
    %v674 = vpack.c.b16 %v666, %v664
    %v675 = vpack.c.b16 %v667, %v665
    %v685 = vsel %vm530, %v643, 0
    %687 = vmatprep.subr.bf16.mxu0 %v669
    %688 = vmatpush1.bf16.msra.mxu0 %v668
    %689 = vmatprep.subr.bf16.mxu0 %v671
    %690 = vmatpush1.bf16.msra.mxu0 %v670
    %691 = vmatprep.subr.bf16.mxu0 %v673
    %692 = vmatpush1.bf16.msra.mxu0 %v672
    %693 = vmatprep.subr.bf16.mxu0 %v675
    %694 = vmatpush1.bf16.msra.mxu0 %v674
    %695 = vmatprep.subr.bf16.mxu0 0
    %696 = vmatpush1.bf16.msra.mxu0 0
    %697 = vmatprep.subr.bf16.mxu0 0
    %698 = vmatpush1.bf16.msra.mxu0 0
    %699 = vmatprep.subr.bf16.mxu0 0
    %700 = vmatpush1.bf16.msra.mxu0 0
    %701 = vmatprep.subr.bf16.mxu0 0
    %702 = vmatpush1.bf16.msra.mxu0 0
    %703 = vmatprep.subr.bf16.mxu0 0
    %704 = vmatpush1.bf16.msra.mxu0 0
    %705 = vmatprep.subr.bf16.mxu0 0
    %706 = vmatpush1.bf16.msra.mxu0 0
    %707 = vmatprep.subr.bf16.mxu0 0
    %708 = vmatpush1.bf16.msra.mxu0 0
    %709 = vmatprep.subr.bf16.mxu0 0
    %710 = vmatpush1.bf16.msra.mxu0 0
    %711 = vmatprep.subr.bf16.mxu0 0
    %712 = vmatpush1.bf16.msra.mxu0 0
    %713 = vmatprep.subr.bf16.mxu0 0
    %714 = vmatpush1.bf16.msra.mxu0 0
    %715 = vmatprep.subr.bf16.mxu0 0
    %716 = vmatpush1.bf16.msra.mxu0 0
    %717 = vmatprep.subr.bf16.mxu0 0
    %718 = vmatpush1.bf16.msra.mxu0 0
    %719 = vmatprep.mubr.bf16.mxu0 0
    %720 = vmatmul.mubr.bf16.gmra.mrb[0].mxu0 %v685
    %v721 = vpop.f32.mrb[0].mxu0
    %v722 = vadd.f32 %v634, %v721
    %v723 = vpop.f32.mrb[0].mxu0
    %v724 = vadd.f32 %v638, %v723
    %v725 = vpop.f32.mrb[0].mxu0
    %v726 = vpop.f32.mrb[0].mxu0
    %727 = vdwg.mxu0
    %728 = vmatprep.subr.mxu0 %v724
    %729 = vmatpush1.msra.mxu0 %v722
    %730 = vmatprep.subr.mxu0 0.0
    %731 = vmatpush1.msra.mxu0 0.0
    %732 = vmatprep.subr.mxu0 0.0
    %733 = vmatpush1.msra.mxu0 0.0
    %734 = vmatprep.subr.mxu0 0.0
    %735 = vmatpush1.msra.mxu0 0.0
    %736 = vmatprep.subr.mxu0 0.0
    %737 = vmatpush1.msra.mxu0 0.0
    %738 = vmatprep.subr.mxu0 0.0
    %739 = vmatpush1.msra.mxu0 0.0
    %740 = vmatprep.subr.mxu0 0.0
    %741 = vmatpush1.msra.mxu0 0.0
    %742 = vmatprep.subr.mxu0 0.0
    %743 = vmatpush1.msra.mxu0 0.0
    %744 = vmatprep.subr.mxu0 0.0
    %745 = vmatpush1.msra.mxu0 0.0
    %746 = vmatprep.subr.mxu0 0.0
    %747 = vmatpush1.msra.mxu0 0.0
    %748 = vmatprep.subr.mxu0 0.0
    %749 = vmatpush1.msra.mxu0 0.0
    %750 = vmatprep.subr.mxu0 0.0
    %751 = vmatpush1.msra.mxu0 0.0
    %752 = vmatprep.subr.mxu0 0.0
    %753 = vmatpush1.msra.mxu0 0.0
    %754 = vmatprep.subr.mxu0 0.0
    %755 = vmatpush1.msra.mxu0 0.0
    %756 = vmatprep.subr.mxu0 0.0
    %757 = vmatpush1.msra.mxu0 0.0
    %758 = vmatprep.subr.mxu0 0.0
    %759 = vmatpush1.msra.mxu0 0.0
    %760 = vmatprep.subr.mxu0 0.0
    %761 = vmatpush1.msra.mxu0 0.0
    %762 = vmatprep.subr.mxu0 0.0
    %763 = vmatpush1.msra.mxu0 0.0
    %764 = vmatprep.subr.mxu0 0.0
    %765 = vmatpush1.msra.mxu0 0.0
    %766 = vmatprep.subr.mxu0 0.0
    %767 = vmatpush1.msra.mxu0 0.0
    %768 = vmatprep.subr.mxu0 0.0
    %769 = vmatpush1.msra.mxu0 0.0
    %770 = vmatprep.subr.mxu0 0.0
    %771 = vmatpush1.msra.mxu0 0.0
    %772 = vmatprep.subr.mxu0 0.0
    %773 = vmatpush1.msra.mxu0 0.0
    %774 = vmatprep.subr.mxu0 0.0
    %775 = vmatpush1.msra.mxu0 0.0
    %776 = vmatprep.subr.mxu0 0.0
    %777 = vmatpush1.msra.mxu0 0.0
    %778 = vmatprep.subr.mxu0 0.0
    %779 = vmatpush1.msra.mxu0 0.0
    %780 = vmatprep.subr.mxu0 0.0
    %781 = vmatpush1.msra.mxu0 0.0
    %782 = vmatprep.subr.mxu0 0.0
    %783 = vmatpush1.msra.mxu0 0.0
    %784 = vmatprep.subr.mxu0 0.0
    %785 = vmatpush1.msra.mxu0 0.0
    %786 = vmatprep.subr.mxu0 0.0
    %787 = vmatpush1.msra.mxu0 0.0
    %788 = vmatprep.subr.mxu0 0.0
    %789 = vmatpush1.msra.mxu0 0.0
    %790 = vmatprep.subr.mxu0 0.0
    %791 = vmatpush1.msra.mxu0 0.0
    %792 = vmatprep.mubr.f32.mxu0 0.0
    %793 = vmatmul.mubr.f32.gmra.mrb[0].mxu0 %v386
    %v794 = vpop.f32.mrb[0].mxu0
    %v795 = vadd.f32 0.0, %v794
    %v796 = vpop.f32.mrb[0].mxu0
    %v797 = vadd.f32 0.0, %v796
    %798 = vdwg.mxu0
    %v799 = vsub.f32 %v722, %v795
    %v800 = vsub.f32 %v724, %v797
    %v801 = vmul.f32 %v174, %v799
    %v802 = vmul.f32 %v175, %v800
    %v803 = vadd.f32 %v795, %v801
    %v804 = vadd.f32 %v797, %v802
    %v805 = vsub.f32 %v795, %v722
    %v806 = vsub.f32 %v797, %v724
    %v807 = vmul.f32 %v174, %v805
    %v808 = vmul.f32 %v175, %v806
    %v809 = vadd.f32 %v722, %v807
    %v810 = vadd.f32 %v724, %v808
    %v811 = vxor.u32 %v803, 2147483648
    %v812 = vmul.f32 %v811, 1.442695
    %v813 = vpow.pop %v812
    %v814 = vadd.f32 %v813, 1.0
    %v815 = vrcp.pop %v814
    %v816 = vmul.f32 1.0, %v815
    %v817 = vmul.f32 %v816, %v627
    %v818 = vadd.f32 %v804, %v817
    %v819 = vtanh.pop %v818
    %v820 = vsub.f32 1.0, %v816
    %822 = vrot.lane.b32.xlu0 %v819, 64
    %v823 = vpop.permute.xlu0 %822
    %v825 = vmul.f32 %v820, %v823
    %v826 = vpack.c.bf16 %v825, %v825
    %828 = vrot.lane.b32.xlu0 %v826, 64
    %v829 = vpop.permute.xlu0 %828
    %v838 = vunpack.c.l.b16 %v614
    %v839 = vunpack.c.h.b16 %v614
    %v840 = vunpack.c.l.b16 %v615
    %v841 = vunpack.c.h.b16 %v615
    %v842 = vunpack.c.l.b16 %v616
    %v843 = vunpack.c.h.b16 %v616
    %v844 = vunpack.c.l.b16 %v617
    %v845 = vunpack.c.h.b16 %v617
    %v846 = vunpack.c.l.b16 %v618
    %v847 = vunpack.c.h.b16 %v618
    %v848 = vunpack.c.l.b16 %v619
    %v849 = vunpack.c.h.b16 %v619
    %v850 = vunpack.c.l.b16 %v620
    %v851 = vunpack.c.h.b16 %v620
    %v852 = vunpack.c.l.b16 %v621
    %v853 = vunpack.c.h.b16 %v621
    %v854 = vpack.c.b16 %v840, %v838
    %v855 = vpack.c.b16 %v841, %v839
    %v856 = vpack.c.b16 %v844, %v842
    %v857 = vpack.c.b16 %v845, %v843
    %v858 = vpack.c.b16 %v848, %v846
    %v859 = vpack.c.b16 %v849, %v847
    %v860 = vpack.c.b16 %v852, %v850
    %v861 = vpack.c.b16 %v853, %v851
    %v871 = vsel %vm530, %v829, 0
    %873 = vmatprep.subr.bf16.mxu0 %v855
    %874 = vmatpush1.bf16.msra.mxu0 %v854
    %875 = vmatprep.subr.bf16.mxu0 %v857
    %876 = vmatpush1.bf16.msra.mxu0 %v856
    %877 = vmatprep.subr.bf16.mxu0 %v859
    %878 = vmatpush1.bf16.msra.mxu0 %v858
    %879 = vmatprep.subr.bf16.mxu0 %v861
    %880 = vmatpush1.bf16.msra.mxu0 %v860
    %881 = vmatprep.subr.bf16.mxu0 0
    %882 = vmatpush1.bf16.msra.mxu0 0
    %883 = vmatprep.subr.bf16.mxu0 0
    %884 = vmatpush1.bf16.msra.mxu0 0
    %885 = vmatprep.subr.bf16.mxu0 0
    %886 = vmatpush1.bf16.msra.mxu0 0
    %887 = vmatprep.subr.bf16.mxu0 0
    %888 = vmatpush1.bf16.msra.mxu0 0
    %889 = vmatprep.subr.bf16.mxu0 0
    %890 = vmatpush1.bf16.msra.mxu0 0
    %891 = vmatprep.subr.bf16.mxu0 0
    %892 = vmatpush1.bf16.msra.mxu0 0
    %893 = vmatprep.subr.bf16.mxu0 0
    %894 = vmatpush1.bf16.msra.mxu0 0
    %895 = vmatprep.subr.bf16.mxu0 0
    %896 = vmatpush1.bf16.msra.mxu0 0
    %897 = vmatprep.subr.bf16.mxu0 0
    %898 = vmatpush1.bf16.msra.mxu0 0
    %899 = vmatprep.subr.bf16.mxu0 0
    %900 = vmatpush1.bf16.msra.mxu0 0
    %901 = vmatprep.subr.bf16.mxu0 0
    %902 = vmatpush1.bf16.msra.mxu0 0
    %903 = vmatprep.subr.bf16.mxu0 0
    %904 = vmatpush1.bf16.msra.mxu0 0
    %905 = vmatprep.mubr.bf16.mxu0 0
    %906 = vmatmul.mubr.bf16.gmra.mrb[0].mxu0 %v871
    %v907 = vpop.f32.mrb[0].mxu0
    %v908 = vadd.f32 0.0, %v907
    %v909 = vpop.f32.mrb[0].mxu0
    %v910 = vadd.f32 0.0, %v909
    %v911 = vpop.f32.mrb[0].mxu0
    %v912 = vpop.f32.mrb[0].mxu0
    %913 = vdwg.mxu0
    %v914 = vadd.f32 %v809, %v908
    %v915 = vxor.u32 %v914, 2147483648
    %v916 = vmul.f32 %v915, 1.442695
    %v917 = vpow.pop %v916
    %v918 = vadd.f32 %v917, 1.0
    %v919 = vrcp.pop %v918
    %v920 = vmul.f32 1.0, %v919
    %v921 = vadd.f32 %v910, %v627
    %v922 = vmul.f32 %v920, %v921
    %v923 = vadd.f32 %v810, %v922
    %v924 = vtanh.pop %v923
    %v925 = vsub.f32 1.0, %v920
    %927 = vrot.lane.b32.xlu0 %v924, 64
    %v928 = vpop.permute.xlu0 %927
    %v930 = vmul.f32 %v925, %v928
    %v931 = vmul.f32 %v920, %v825
    %v932 = vadd.f32 %v930, %v931
    %v933 = vsub.f32 %v825, %v932
    %v934 = vlaneseq
    %v935 = vshrl.u32 %v934, 7
    %v936 = vsub.s32 0, %v935
    %v937 = vrot.slane %v174, %v936
    %939 = vrot.lane.b32.xlu0 %v933, 64
    %v940 = vpop.permute.xlu0 %939
    %v942 = vmul.f32 %v937, %v940
    %944 = vrot.lane.b32.xlu0 %v942, 64
    %v945 = vpop.permute.xlu0 %944
    %v947 = vadd.f32 %v932, %v945
    %v948 = vsub.f32 %v932, %v825
    %950 = vrot.lane.b32.xlu0 %v948, 64
    %v951 = vpop.permute.xlu0 %950
    %v953 = vmul.f32 %v937, %v951
    %955 = vrot.lane.b32.xlu0 %v953, 64
    %v956 = vpop.permute.xlu0 %955
    %v958 = vadd.f32 %v825, %v956
    %960 = vrot.lane.b32.xlu0 %v947, 96
    %v961 = vpop.permute.xlu0 %960
    %v963 = vadd.f32 %v947, %v961
    %965 = vrot.lane.b32.xlu0 %v958, 96
    %v966 = vpop.permute.xlu0 %965
    %v968 = vadd.f32 %v958, %v966
    %v969 = vld [vmem:[%s12] sm:$0x1]
    %v970 = vtanh.pop %v963
    %v972 = vlaneseq
    %v973 = vshrl.u32 %v972, 7
    %v974 = vsub.s32 0, %v973
    %v975 = vrot.slane %v969, %v974
    %976 = vrot.lane.b32.xlu0 %v975, 64
    %v977 = vpop.permute.xlu0 %976
    %v979 = vmul.f32 %v970, %v977
    %981 = vrot.lane.b32.xlu0 %v979, 64
    %v982 = vpop.permute.xlu0 %981
    %vm984 = vcmask 261120
    %v985 = vsel %vm984, %v982, 0.0
    %986 = vadd.xlane.f32.xlu0 %v985
    %v987 = vpop.xlane.xlu0 %986
    %v988 = vtanh.pop %v968
    %v989 = vmul.f32 %v988, %v977
    %991 = vrot.lane.b32.xlu0 %v989, 64
    %v992 = vpop.permute.xlu0 %991
    %v994 = vsel %vm984, %v992, 0.0
    %995 = vadd.xlane.f32.xlu0 %v994
    %v996 = vpop.xlane.xlu0 %995
    %v997 = vmax.f32 %v987, %v996
    %v998 = vsub.f32 %v987, %v997
    %v999 = vmul.f32 %v998, 1.442695
    %v1000 = vpow.pop %v999
    %v1001 = vsub.f32 %v996, %v997
    %v1002 = vmul.f32 %v1001, 1.442695
    %v1003 = vpow.pop %v1002
    %v1004 = vadd.f32 %v1000, %v1003
    %v1005 = vrcp.pop %v1004
    %v1006 = vmul.f32 %v1000, %v1005
    %v1007 = vmul.f32 %v1006, %v963
    %v1008 = vmul.f32 %v1003, %v1005
    %v1009 = vmul.f32 %v1008, %v968
    %v1010 = vadd.f32 %v1007, %v1009
    %v1011 = vld [vmem:[%s3] sm:$0xf]
    %1013 = vrot.lane.b32.xlu0 %v1010, 64
    %v1014 = vpop.permute.xlu0 %1013
    %v1017 = vsel %vm384, %v1011, 0
    %1019 = vmatprep.subr.mxu0 0.0
    %1020 = vmatpush1.msra.mxu0 %v1014
    %1021 = vmatprep.subr.mxu0 0.0
    %1022 = vmatpush1.msra.mxu0 0.0
    %1023 = vmatprep.subr.mxu0 0.0
    %1024 = vmatpush1.msra.mxu0 0.0
    %1025 = vmatprep.subr.mxu0 0.0
    %1026 = vmatpush1.msra.mxu0 0.0
    %1027 = vmatprep.subr.mxu0 0.0
    %1028 = vmatpush1.msra.mxu0 0.0
    %1029 = vmatprep.subr.mxu0 0.0
    %1030 = vmatpush1.msra.mxu0 0.0
    %1031 = vmatprep.subr.mxu0 0.0
    %1032 = vmatpush1.msra.mxu0 0.0
    %1033 = vmatprep.subr.mxu0 0.0
    %1034 = vmatpush1.msra.mxu0 0.0
    %1035 = vmatprep.subr.mxu0 0.0
    %1036 = vmatpush1.msra.mxu0 0.0
    %1037 = vmatprep.subr.mxu0 0.0
    %1038 = vmatpush1.msra.mxu0 0.0
    %1039 = vmatprep.subr.mxu0 0.0
    %1040 = vmatpush1.msra.mxu0 0.0
    %1041 = vmatprep.subr.mxu0 0.0
    %1042 = vmatpush1.msra.mxu0 0.0
    %1043 = vmatprep.subr.mxu0 0.0
    %1044 = vmatpush1.msra.mxu0 0.0
    %1045 = vmatprep.subr.mxu0 0.0
    %1046 = vmatpush1.msra.mxu0 0.0
    %1047 = vmatprep.subr.mxu0 0.0
    %1048 = vmatpush1.msra.mxu0 0.0
    %1049 = vmatprep.subr.mxu0 0.0
    %1050 = vmatpush1.msra.mxu0 0.0
    %1051 = vmatprep.subr.mxu0 0.0
    %1052 = vmatpush1.msra.mxu0 0.0
    %1053 = vmatprep.subr.mxu0 0.0
    %1054 = vmatpush1.msra.mxu0 0.0
    %1055 = vmatprep.subr.mxu0 0.0
    %1056 = vmatpush1.msra.mxu0 0.0
    %1057 = vmatprep.subr.mxu0 0.0
    %1058 = vmatpush1.msra.mxu0 0.0
    %1059 = vmatprep.subr.mxu0 0.0
    %1060 = vmatpush1.msra.mxu0 0.0
    %1061 = vmatprep.subr.mxu0 0.0
    %1062 = vmatpush1.msra.mxu0 0.0
    %1063 = vmatprep.subr.mxu0 0.0
    %1064 = vmatpush1.msra.mxu0 0.0
    %1065 = vmatprep.subr.mxu0 0.0
    %1066 = vmatpush1.msra.mxu0 0.0
    %1067 = vmatprep.subr.mxu0 0.0
    %1068 = vmatpush1.msra.mxu0 0.0
    %1069 = vmatprep.subr.mxu0 0.0
    %1070 = vmatpush1.msra.mxu0 0.0
    %1071 = vmatprep.subr.mxu0 0.0
    %1072 = vmatpush1.msra.mxu0 0.0
    %1073 = vmatprep.subr.mxu0 0.0
    %1074 = vmatpush1.msra.mxu0 0.0
    %1075 = vmatprep.subr.mxu0 0.0
    %1076 = vmatpush1.msra.mxu0 0.0
    %1077 = vmatprep.subr.mxu0 0.0
    %1078 = vmatpush1.msra.mxu0 0.0
    %1079 = vmatprep.subr.mxu0 0.0
    %1080 = vmatpush1.msra.mxu0 0.0
    %1081 = vmatprep.subr.mxu0 0.0
    %1082 = vmatpush1.msra.mxu0 0.0
    %1083 = vmatprep.mubr.f32.mxu0 0.0
    %1084 = vmatmul.mubr.f32.gmra.mrb[0].mxu0 %v1017
    %v1085 = vpop.f32.mrb[0].mxu0
    %v1086 = vadd.f32 0.0, %v1085
    %v1087 = vpop.f32.mrb[0].mxu0
    %1088 = vdwg.mxu0
    %v1089 = vtanh.pop %v1086
    %vm1090 = vcmask 257024
    %1091 = vst.msk [vmem:[#allocation2] sm:$0xf] %vm1090, %v1089
    // Predicated region
    $region54: #{rnn_module_forward.1} parent=1 // pred_check
      _
    $region55: #{rnn_module_forward.1} parent=1 // pred_check_branch
      %1093 = sbr.rel (0) target = $region57
    $region56: #{rnn_module_forward.1} parent=1 // pred_region
      %s1095 = ssub.s32 64, 64
      %1096 = vsyncadd [#allocation3], %s1095
      %s1098 = sshll.u32 [#allocation2], 4
      %s1099 = int_to_ptr.vmem [resolvable:$true] %s1098
      %1101 = dma.vmem_to_hbm [thread:$0]  %s1099, 64, %s13, [#allocation3]
    $region57: #{rnn_module_forward.1} parent=1 // pred_fallthru
      _
    // Predicated region
    $region58: #{rnn_module_forward.1} parent=1 // pred_check
      _
    $region59: #{rnn_module_forward.1} parent=1 // pred_check_branch
      %1103 = sbr.rel (0) target = $region61
    $region60: #{rnn_module_forward.1} parent=1 // pred_region
      %1104 = dma.done [#allocation3], 64
    $region61: #{rnn_module_forward.1} parent=1 // pred_fallthru
      _
    %1105 = vsyncpa [#allocation3], 1

</llo_original>
